<compile_context>
chip_gen: v5e
topology: v5e:2x2
jax: 0.10.0
libtpu: 0.0.40
codegen_flags: <defaults>
</compile_context>

<pallas_src>
import functools
import numpy as np
import jax
import jax.numpy as jnp
from jax import lax
from jax.experimental import pallas as pl
from jax.experimental.pallas import tpu as pltpu

F32 = jnp.float32
BF16 = jnp.bfloat16


def _round_up(x, m):
    return ((x + m - 1) // m) * m


# ---------------------------------------------------------------------------
# Generation-aware tuning knobs
# ---------------------------------------------------------------------------
def _device_kind():
    try:
        return jax.devices()[0].device_kind.lower()
    except Exception:
        return ""


def _detect_vmem_limit():
    cap = None
    try:
        cap = int(pltpu.get_tpu_info().vmem_capacity_bytes)
    except Exception:
        cap = None
    if cap is None:
        # AOT / CPU-trace fallback: detect via device_kind so v5e/v6e are not
        # silently capped at a v7x-sized budget.
        kind = _device_kind()
        cap = (64 if ("v7" in kind or "7x" in kind) else 128) * 1024 * 1024
    return min((cap * 3) // 4, 96 * 1024 * 1024)


def _detect_chip_tuning():
    kind = _device_kind()
    if "v5" in kind:                       # v5e: 128x128 MXU, 1 TensorCore
        return 128, 256, 1
    if "v7" in kind or "7x" in kind:       # v7x: 2 TensorCores, 64 MiB VMEM
        return 256, 512, 2
    return 256, 512, 1                     # v6e default


_VMEM_LIMIT = _detect_vmem_limit()
_TM_CAP, _TN_CAP, _MIN_GRID = _detect_chip_tuning()


def _cparams(n_parallel_axes):
    return pltpu.CompilerParams(
        dimension_semantics=("parallel",) * n_parallel_axes,
        vmem_limit_bytes=_VMEM_LIMIT)


# ---------------------------------------------------------------------------
# Fused matmul + BN/bias + activation (+ residual) kernel
# ---------------------------------------------------------------------------
def _matmul_epilogue_kernel(*refs, relu, has_residual):
    if has_residual:
        a_ref, b_ref, scale_ref, shift_ref, r_ref, o_ref = refs
    else:
        a_ref, b_ref, scale_ref, shift_ref, o_ref = refs
        r_ref = None
    acc = jnp.dot(a_ref[...], b_ref[...], preferred_element_type=jnp.float32)
    out = acc * scale_ref[...] + shift_ref[...]
    if r_ref is not None:
        out = out + r_ref[...].astype(jnp.float32)
    if relu:
        out = jnp.maximum(out, 0.0)
    o_ref[...] = out.astype(o_ref.dtype)


def matmul_bias_act(a, b, scale=None, shift=None, relu=False, residual=None,
                    out_dtype=BF16):
    """out = act((a @ b) * scale + shift [+ residual]); scale/shift per column.

    bf16 MXU operands, f32 accumulation/epilogue, lane-dense (mult-of-128)
    output stores, optional N grid axis for wide outputs.
    """
    m, k = a.shape
    k2, n = b.shape
    assert k == k2
    if scale is None:
        scale = jnp.ones((n,), F32)
    if shift is None:
        shift = jnp.zeros((n,), F32)
    a = a.astype(BF16)
    b = b.astype(BF16)
    scale = scale.reshape(1, n).astype(F32)
    shift = shift.reshape(1, n).astype(F32)

    # Pad EVERY output width to a multiple of 128 (full-vreg stores).
    n_pad = _round_up(n, 128)
    if n_pad != n:
        b = jnp.pad(b, ((0, 0), (0, n_pad - n)))
        scale = jnp.pad(scale, ((0, 0), (0, n_pad - n)))
        shift = jnp.pad(shift, ((0, 0), (0, n_pad - n)))
        if residual is not None:
            residual = jnp.pad(residual, ((0, 0), (0, n_pad - n)))

    # N tiling for wide outputs (c3 / downsample convs, N up to 2048).
    tn = n_pad
    if n_pad > _TN_CAP:
        for cand in range(_TN_CAP, 0, -128):
            if n_pad % cand == 0:
                tn = cand
                break

    tm = min(_TM_CAP, _round_up(m, 8))
    if _MIN_GRID > 1 and m >= 512 and (n_pad // tn) < _MIN_GRID:
        # only split M for dual-TC when there is real work and no N split
        tm = min(tm, _round_up((m + _MIN_GRID - 1) // _MIN_GRID, 8))
    mp = _round_up(m, tm)
    if mp != m:
        a = jnp.pad(a, ((0, mp - m), (0, 0)))
        if residual is not None:
            residual = jnp.pad(residual, ((0, mp - m), (0, 0)))

    # TODO(synk): single-buffering (pl.Buffered(1)) of the grid-invariant b/
    # scale/shift blocks was considered for v7x VMEM headroom but left out to
    # keep the lowering path maximally portable.
    operands = [a, b, scale, shift]
    in_specs = [pl.BlockSpec((tm, k), lambda i, j: (i, 0)),
                pl.BlockSpec((k, tn), lambda i, j: (0, j)),
                pl.BlockSpec((1, tn), lambda i, j: (0, j)),
                pl.BlockSpec((1, tn), lambda i, j: (0, j))]
    if residual is not None:
        operands.append(residual.astype(BF16))
        in_specs.append(pl.BlockSpec((tm, tn), lambda i, j: (i, j)))

    out = pl.pallas_call(
        functools.partial(_matmul_epilogue_kernel, relu=relu,
                          has_residual=residual is not None),
        out_shape=jax.ShapeDtypeStruct((mp, n_pad), out_dtype),
        grid_spec=pltpu.PrefetchScalarGridSpec(
            num_scalar_prefetch=0,
            grid=(mp // tm, n_pad // tn),
            in_specs=in_specs,
            out_specs=pl.BlockSpec((tm, tn), lambda i, j: (i, j)),
        ),
        compiler_params=_cparams(2),
    )(*operands)
    if mp != m or n_pad != n:
        out = out[:m, :n]
    return out


# ---------------------------------------------------------------------------
# MaxPool2d(3, stride=2, padding=1) — even/odd phase split, in-kernel taps
# ---------------------------------------------------------------------------
def _maxpool_kernel(ee_ref, eo_ref, oe_ref, oo_ref, o_ref):
    oh = o_ref.shape[1]
    ow = o_ref.shape[2]
    m = oo_ref[0]                                        # tap (1,1)
    m = jnp.maximum(m, ee_ref[0, 0:oh, 0:ow, :])         # (0,0)
    m = jnp.maximum(m, ee_ref[0, 0:oh, 1:ow + 1, :])     # (0,2)
    m = jnp.maximum(m, ee_ref[0, 1:oh + 1, 0:ow, :])     # (2,0)
    m = jnp.maximum(m, ee_ref[0, 1:oh + 1, 1:ow + 1, :])  # (2,2)
    m = jnp.maximum(m, eo_ref[0, 0:oh, :, :])            # (0,1)
    m = jnp.maximum(m, eo_ref[0, 1:oh + 1, :, :])        # (2,1)
    m = jnp.maximum(m, oe_ref[0, :, 0:ow, :])            # (1,0)
    m = jnp.maximum(m, oe_ref[0, :, 1:ow + 1, :])        # (1,2)
    o_ref[0] = m


def maxpool2d_3x3_s2_p1(x):
    # PyTorch MaxPool2d(kernel_size=3, stride=2, padding=1); x is NHWC bf16.
    # The padded activation is split ONCE into 4 even/odd phase tensors so all
    # nine 3x3 taps become contiguous in-kernel slices (no 9x window blow-up).
    bsz, h, w, c = x.shape
    oh = (h + 2 - 3) // 2 + 1
    ow = (w + 2 - 3) // 2 + 1
    neg = float("-inf")
    xp = jnp.pad(x, ((0, 0), (1, 1), (1, 1), (0, 0)), constant_values=neg)
    ee = xp[:, 0:2 * oh + 1:2, 0:2 * ow + 1:2, :]        # (B, oh+1, ow+1, C)
    eo = xp[:, 0:2 * oh + 1:2, 1:2 * ow:2, :]            # (B, oh+1, ow,   C)
    oe = xp[:, 1:2 * oh:2, 0:2 * ow + 1:2, :]            # (B, oh,   ow+1, C)
    oo = xp[:, 1:2 * oh:2, 1:2 * ow:2, :]                # (B, oh,   ow,   C)
    return pl.pallas_call(
        _maxpool_kernel,
        out_shape=jax.ShapeDtypeStruct((bsz, oh, ow, c), BF16),
        grid_spec=pltpu.PrefetchScalarGridSpec(
            num_scalar_prefetch=0,
            grid=(bsz,),
            in_specs=[pl.BlockSpec((1, oh + 1, ow + 1, c), lambda i: (i, 0, 0, 0)),
                      pl.BlockSpec((1, oh + 1, ow, c), lambda i: (i, 0, 0, 0)),
                      pl.BlockSpec((1, oh, ow + 1, c), lambda i: (i, 0, 0, 0)),
                      pl.BlockSpec((1, oh, ow, c), lambda i: (i, 0, 0, 0))],
            out_specs=pl.BlockSpec((1, oh, ow, c), lambda i: (i, 0, 0, 0)),
        ),
        compiler_params=_cparams(1),
    )(ee, eo, oe, oo)


# ---------------------------------------------------------------------------
# Stand-alone LayerNorm (wav2vec-frontend LN only; transformer LNs are fused)
# ---------------------------------------------------------------------------
def _layernorm_kernel(x_ref, g_ref, b_ref, o_ref, *, eps):
    x = x_ref[...].astype(jnp.float32)
    mu = jnp.mean(x, axis=-1, keepdims=True)
    var = jnp.mean((x - mu) ** 2, axis=-1, keepdims=True)
    y = (x - mu) * lax.rsqrt(var + eps) * g_ref[...] + b_ref[...]
    o_ref[...] = y.astype(o_ref.dtype)


def layer_norm(x, gamma, beta, eps=1e-5, out_dtype=BF16):
    shp = x.shape
    d = shp[-1]
    xr = x.reshape(-1, d)
    m = xr.shape[0]
    tm = min(_TM_CAP, _round_up(m, 16))     # bf16-friendly sublane multiple
    mp = _round_up(m, tm)
    if mp != m:
        xr = jnp.pad(xr, ((0, mp - m), (0, 0)))
    out = pl.pallas_call(
        functools.partial(_layernorm_kernel, eps=eps),
        out_shape=jax.ShapeDtypeStruct((mp, d), out_dtype),
        grid_spec=pltpu.PrefetchScalarGridSpec(
            num_scalar_prefetch=0,
            grid=(mp // tm,),
            in_specs=[pl.BlockSpec((tm, d), lambda i: (i, 0)),
                      pl.BlockSpec((1, d), lambda i: (0, 0)),
                      pl.BlockSpec((1, d), lambda i: (0, 0))],
            out_specs=pl.BlockSpec((tm, d), lambda i: (i, 0)),
        ),
        compiler_params=_cparams(1),
    )(xr, gamma.reshape(1, d).astype(F32), beta.reshape(1, d).astype(F32))
    return out[:m].reshape(shp)


# ---------------------------------------------------------------------------
# Fully fused MHA sub-layer:  LayerNorm(x + MHA(x, mem))  in one pallas_call
# ---------------------------------------------------------------------------
def _mha_ln_kernel(x_ref, mem_ref, wq_ref, bq_ref, wk_ref, bk_ref,
                   wv_ref, bv_ref, wo_ref, bo_ref, g_ref, b_ref, o_ref, *,
                   n_heads, scale, tk_valid, eps):
    x = x_ref[0]                          # (Tq, D) bf16
    mem = mem_ref[0]                      # (Tk, D) bf16
    tq, d = x.shape
    tk = mem.shape[0]
    # key-validity mask (padded key rows are excluded); futur_masking=False so
    # there is no causal mask.
    kmask = lax.broadcasted_iota(jnp.int32, (tq, tk), 1) < tk_valid
    acc = jnp.zeros((tq, d), jnp.float32)
    for h in range(n_heads):
        qh = (jnp.dot(x, wq_ref[h], preferred_element_type=jnp.float32)
              + bq_ref[h]).astype(BF16)                         # (Tq, dk)
        kh = (jnp.dot(mem, wk_ref[h], preferred_element_type=jnp.float32)
              + bk_ref[h]).astype(BF16)                         # (Tk, dk)
        vh = (jnp.dot(mem, wv_ref[h], preferred_element_type=jnp.float32)
              + bv_ref[h]).astype(BF16)                         # (Tk, dv)
        s = jnp.einsum("qd,kd->qk", qh, kh,
                       preferred_element_type=jnp.float32) * scale
        s = jnp.where(kmask, s, -1e30)
        s = s - jnp.max(s, axis=-1, keepdims=True)
        p = jnp.exp(s)
        p = p * pl.reciprocal(jnp.sum(p, axis=-1, keepdims=True), approx=True)
        oh = jnp.dot(p.astype(BF16), vh, preferred_element_type=jnp.float32)
        acc = acc + jnp.dot(oh.astype(BF16), wo_ref[h],
                            preferred_element_type=jnp.float32)
    y = acc + bo_ref[...] + x.astype(jnp.float32)               # residual
    mu = jnp.mean(y, axis=-1, keepdims=True)
    var = jnp.mean((y - mu) ** 2, axis=-1, keepdims=True)
    y = (y - mu) * lax.rsqrt(var + eps) * g_ref[...] + b_ref[...]
    o_ref[0] = y.astype(o_ref.dtype)


def mha_ln(x, mem, p, ln, tk_valid):
    """One pallas_call per attention sub-layer; grid over batch (>=2 steps)."""
    bsz, tq, d = x.shape
    tk = mem.shape[1]
    n_heads, d_k, d_v = p['n_heads'], p['d_k'], p['d_v']
    scale = 1.0 / float(np.sqrt(d_k))
    in_specs = [
        pl.BlockSpec((1, tq, d), lambda i: (i, 0, 0)),
        pl.BlockSpec((1, tk, d), lambda i: (i, 0, 0)),
        pl.BlockSpec((n_heads, d, d_k), lambda i: (0, 0, 0)),
        pl.BlockSpec((n_heads, 1, d_k), lambda i: (0, 0, 0)),
        pl.BlockSpec((n_heads, d, d_k), lambda i: (0, 0, 0)),
        pl.BlockSpec((n_heads, 1, d_k), lambda i: (0, 0, 0)),
        pl.BlockSpec((n_heads, d, d_v), lambda i: (0, 0, 0)),
        pl.BlockSpec((n_heads, 1, d_v), lambda i: (0, 0, 0)),
        pl.BlockSpec((n_heads, d_v, d), lambda i: (0, 0, 0)),
        pl.BlockSpec((1, d), lambda i: (0, 0)),
        pl.BlockSpec((1, d), lambda i: (0, 0)),
        pl.BlockSpec((1, d), lambda i: (0, 0)),
    ]
    return pl.pallas_call(
        functools.partial(_mha_ln_kernel, n_heads=n_heads, scale=scale,
                          tk_valid=tk_valid, eps=1e-5),
        out_shape=jax.ShapeDtypeStruct((bsz, tq, d), BF16),
        grid_spec=pltpu.PrefetchScalarGridSpec(
            num_scalar_prefetch=0,
            grid=(bsz,),
            in_specs=in_specs,
            out_specs=pl.BlockSpec((1, tq, d), lambda i: (i, 0, 0)),
        ),
        compiler_params=_cparams(1),
    )(x.astype(BF16), mem.astype(BF16),
      p['wq3'], p['bq3'], p['wk3'], p['bk3'], p['wv3'], p['bv3'],
      p['wo3'], p['bo'].reshape(1, d),
      ln['g'].reshape(1, d), ln['b'].reshape(1, d))


# ---------------------------------------------------------------------------
# Fully fused FFN sub-layer:  LayerNorm(x + W2 relu(W1 x))  in one pallas_call
# ---------------------------------------------------------------------------
def _ffn_ln_kernel(x_ref, w1_ref, b1_ref, w2_ref, b2_ref, g_ref, b_ref, o_ref,
                   *, eps):
    x = x_ref[0]                                                 # (T, D) bf16
    h = jnp.dot(x, w1_ref[...], preferred_element_type=jnp.float32) + b1_ref[...]
    h = jnp.maximum(h, 0.0).astype(BF16)
    y = jnp.dot(h, w2_ref[...], preferred_element_type=jnp.float32) + b2_ref[...]
    y = y + x.astype(jnp.float32)                                # residual
    mu = jnp.mean(y, axis=-1, keepdims=True)
    var = jnp.mean((y - mu) ** 2, axis=-1, keepdims=True)
    y = (y - mu) * lax.rsqrt(var + eps) * g_ref[...] + b_ref[...]
    o_ref[0] = y.astype(o_ref.dtype)


def ffn_ln(x, p, ln):
    bsz, t, d = x.shape
    d_ff = p['w1']['w'].shape[1]
    return pl.pallas_call(
        functools.partial(_ffn_ln_kernel, eps=1e-5),
        out_shape=jax.ShapeDtypeStruct((bsz, t, d), BF16),
        grid_spec=pltpu.PrefetchScalarGridSpec(
            num_scalar_prefetch=0,
            grid=(bsz,),
            in_specs=[pl.BlockSpec((1, t, d), lambda i: (i, 0, 0)),
                      pl.BlockSpec((d, d_ff), lambda i: (0, 0)),
                      pl.BlockSpec((1, d_ff), lambda i: (0, 0)),
                      pl.BlockSpec((d_ff, d), lambda i: (0, 0)),
                      pl.BlockSpec((1, d), lambda i: (0, 0)),
                      pl.BlockSpec((1, d), lambda i: (0, 0)),
                      pl.BlockSpec((1, d), lambda i: (0, 0))],
            out_specs=pl.BlockSpec((1, t, d), lambda i: (i, 0, 0)),
        ),
        compiler_params=_cparams(1),
    )(x.astype(BF16), p['w1']['w'], p['w1']['b'].reshape(1, d_ff),
      p['w2']['w'], p['w2']['b'].reshape(1, d),
      ln['g'].reshape(1, d), ln['b'].reshape(1, d))


# ---------------------------------------------------------------------------
# Deterministic parameter init
# ---------------------------------------------------------------------------
_ROOT_KEY = jax.random.PRNGKey(0)
_COUNTER = [0]


def _next_key():
    _COUNTER[0] += 1
    return jax.random.fold_in(_ROOT_KEY, _COUNTER[0])


def _he(shape, fan_in):
    return (jax.random.normal(_next_key(), shape, F32)
            * np.sqrt(2.0 / fan_in)).astype(F32)


def _conv_bn_params(cin, cout, k):
    # im2col tap ordering is (tap-major, channel-minor); self-consistent with
    # this random init — when importing real PyTorch OIHW weights the flatten
    # order must match exactly.
    w = _he((k * k * cin, cout), k * k * cin)
    gamma = 1.0 + 0.1 * jax.random.normal(_next_key(), (cout,), F32)
    beta = 0.1 * jax.random.normal(_next_key(), (cout,), F32)
    mean = 0.1 * jax.random.normal(_next_key(), (cout,), F32)
    var = 1.0 + 0.1 * jnp.abs(jax.random.normal(_next_key(), (cout,), F32))
    scale = gamma / jnp.sqrt(var + 1e-5)
    shift = beta - mean * scale
    return {'w': w.astype(BF16), 'scale': scale, 'shift': shift, 'k': k}


def _conv1d_params(cin, cout, k):
    return {'w': _he((k * cin, cout), k * cin).astype(BF16),
            'scale': jnp.ones((cout,), F32),
            'shift': jnp.zeros((cout,), F32), 'k': k}


def _linear_params(din, dout):
    return {'w': _he((din, dout), din).astype(BF16),
            'b': jnp.zeros((dout,), F32)}


def _ln_params(d):
    return {'g': jnp.ones((d,), F32), 'b': jnp.zeros((d,), F32)}


def _mha_params(d_model, n_heads, d_k, d_v):
    def per_head_cols(w, dh):                 # (D, H*dh) -> (H, D, dh)
        return jnp.transpose(w.reshape(d_model, n_heads, dh), (1, 0, 2))
    wq = _he((d_model, n_heads * d_k), d_model)
    wk = _he((d_model, n_heads * d_k), d_model)
    wv = _he((d_model, n_heads * d_v), d_model)
    wo = _he((n_heads * d_v, d_model), n_heads * d_v)
    return {'wq3': per_head_cols(wq, d_k).astype(BF16),
            'bq3': jnp.zeros((n_heads, 1, d_k), F32),
            'wk3': per_head_cols(wk, d_k).astype(BF16),
            'bk3': jnp.zeros((n_heads, 1, d_k), F32),   # separate K bias slot
            'wv3': per_head_cols(wv, d_v).astype(BF16),
            'bv3': jnp.zeros((n_heads, 1, d_v), F32),
            'wo3': wo.reshape(n_heads, d_v, d_model).astype(BF16),
            'bo': jnp.zeros((d_model,), F32),
            'n_heads': n_heads, 'd_k': d_k, 'd_v': d_v}


# ---------------------------------------------------------------------------
# Conv helpers: im2col (bf16 patches, JAX slicing glue) + Pallas matmul
# ---------------------------------------------------------------------------
def conv2d_bn(x, p, stride, pad, relu, residual=None):
    # TODO(synk): a K-reduction grid over the 9 taps (no im2col blow-up) is the
    # right structure for large images; at these sizes the patch tensors are
    # tiny so the simpler im2col path is kept.
    k = p['k']
    bsz, h, w, cin = x.shape
    if pad:
        x = jnp.pad(x, ((0, 0), (pad, pad), (pad, pad), (0, 0)))
    hp, wp = x.shape[1], x.shape[2]
    oh = (hp - k) // stride + 1
    ow = (wp - k) // stride + 1
    if k == 1 and stride == 1:
        patches = x.reshape(bsz * oh * ow, cin)
    else:
        cols = []
        for i in range(k):
            for j in range(k):
                cols.append(x[:, i:i + (oh - 1) * stride + 1:stride,
                              j:j + (ow - 1) * stride + 1:stride, :])
        patches = jnp.concatenate(cols, axis=-1).reshape(
            bsz * oh * ow, k * k * cin)
    res2d = None if residual is None else residual.reshape(bsz * oh * ow, -1)
    out = matmul_bias_act(patches, p['w'], p['scale'], p['shift'],
                          relu=relu, residual=res2d)
    return out.reshape(bsz, oh, ow, -1)


def conv1d_relu(x, p, stride):
    k = p['k']
    bsz, l, cin = x.shape
    ol = (l - k) // stride + 1
    cols = [x[:, i:i + (ol - 1) * stride + 1:stride, :] for i in range(k)]
    patches = jnp.concatenate(cols, axis=-1).reshape(bsz * ol, k * cin)
    out = matmul_bias_act(patches, p['w'], p['scale'], p['shift'], relu=True)
    return out.reshape(bsz, ol, -1)


# ---------------------------------------------------------------------------
# Visual backbone: ResNet-50 body (avgpool / fc replaced by Identity)
# ---------------------------------------------------------------------------
def make_resnet50_params():
    params = {'conv1': _conv_bn_params(3, 64, 7), 'layers': []}
    in_c = 64
    for width, n_blocks, stride in ((64, 3, 1), (128, 4, 2),
                                    (256, 6, 2), (512, 3, 2)):
        blocks = []
        for bi in range(n_blocks):
            s = stride if bi == 0 else 1
            blk = {'stride': s,
                   'c1': _conv_bn_params(in_c, width, 1),
                   'c2': _conv_bn_params(width, width, 3),
                   'c3': _conv_bn_params(width, width * 4, 1)}
            if s != 1 or in_c != width * 4:
                blk['ds'] = _conv_bn_params(in_c, width * 4, 1)
            blocks.append(blk)
            in_c = width * 4
        params['layers'].append(blocks)
    return params


def resnet50_forward(params, x):
    # conv1 -> bn1 -> relu -> maxpool -> layer1..4 ; avgpool & fc are Identity.
    x = conv2d_bn(x, params['conv1'], stride=2, pad=3, relu=True)
    x = maxpool2d_3x3_s2_p1(x)
    for blocks in params['layers']:
        for blk in blocks:
            if 'ds' in blk:
                identity = conv2d_bn(x, blk['ds'], stride=blk['stride'],
                                     pad=0, relu=False)
            else:
                identity = x
            out = conv2d_bn(x, blk['c1'], stride=1, pad=0, relu=True)
            out = conv2d_bn(out, blk['c2'], stride=blk['stride'], pad=1,
                            relu=True)
            # residual add + ReLU fused into the c3 matmul epilogue
            x = conv2d_bn(out, blk['c3'], stride=1, pad=0, relu=True,
                          residual=identity)
    return x  # (B, H/32, W/32, 2048)


# ---------------------------------------------------------------------------
# Transformer pieces (encoder / decoder) — 2-3 pallas_calls per block
# ---------------------------------------------------------------------------
def _ffn_params(d_model, d_ff):
    return {'w1': _linear_params(d_model, d_ff),
            'w2': _linear_params(d_ff, d_model)}


def _encoder_block_params(d_model, n_heads, d_k, d_v, d_ff):
    return {'attn': _mha_params(d_model, n_heads, d_k, d_v),
            'ln1': _ln_params(d_model),
            'ffn': _ffn_params(d_model, d_ff),
            'ln2': _ln_params(d_model)}


def encoder_block(x, p, t_valid):
    x = mha_ln(x, x, p['attn'], p['ln1'], tk_valid=t_valid)
    x = ffn_ln(x, p['ffn'], p['ln2'])
    return x


def _decoder_block_params(d_model, n_heads, d_k, d_v, d_ff):
    return {'self': _mha_params(d_model, n_heads, d_k, d_v),
            'ln1': _ln_params(d_model),
            'cross': _mha_params(d_model, n_heads, d_k, d_v),
            'ln2': _ln_params(d_model),
            'ffn': _ffn_params(d_model, d_ff),
            'ln3': _ln_params(d_model)}


def decoder_block(x, memory, p, t_valid, mem_valid):
    # futur_masking=False -> no causal mask on the self-attention.
    x = mha_ln(x, x, p['self'], p['ln1'], tk_valid=t_valid)
    x = mha_ln(x, memory, p['cross'], p['ln2'], tk_valid=mem_valid)
    x = ffn_ln(x, p['ffn'], p['ln3'])
    return x


# ---------------------------------------------------------------------------
# Audio backbone
# ---------------------------------------------------------------------------
def make_audio_backbone_params(d_model=512, n_blocks=2):
    # TODO(synk): exact apop Encoder(config='conv_attention',
    # wav2vec_frontend=True, input_proj='base') source is unavailable; this is
    # a structurally faithful stand-in (strided conv frontend -> layer-norm ->
    # input proj -> self-attention encoder blocks) producing (B, T, 512).
    frontend = [(_conv1d_params(1, 64, 10), 5),
                (_conv1d_params(64, 128, 8), 4),
                (_conv1d_params(128, 512, 4), 2)]
    return {'frontend': frontend,
            'fe_ln': _ln_params(512),
            'proj': _linear_params(512, d_model),
            'blocks': [_encoder_block_params(d_model, 8, 64, 64, 1024)
                       for _ in range(n_blocks)]}


def audio_backbone_forward(params, audio):
    x = audio[:, :, None].astype(BF16)                 # (B, L, 1)
    for cp, stride in params['frontend']:
        x = conv1d_relu(x, cp, stride)
    bsz, t, c = x.shape
    # Pad the token axis ONCE and carry the padded shape through the whole
    # transformer (padded keys are masked inside the attention kernels).
    t_pad = _round_up(t, 8)
    if t_pad != t:
        x = jnp.pad(x, ((0, 0), (0, t_pad - t), (0, 0)))
    x = layer_norm(x, params['fe_ln']['g'], params['fe_ln']['b'])
    x = matmul_bias_act(x.reshape(bsz * t_pad, c), params['proj']['w'],
                        shift=params['proj']['b']).reshape(bsz, t_pad, -1)
    for bp in params['blocks']:
        x = encoder_block(x, bp, t_valid=t)
    return x, t                                        # padded (B, Tp, 512)


# ---------------------------------------------------------------------------
# Full AudioVisualModel
# ---------------------------------------------------------------------------
def make_audio_visual_model_params(output_size, d_model=512, n_blocks=4,
                                   d_keys=64, d_values=64, n_heads=8,
                                   d_ff=1024):
    return {
        'visual_backbone': make_resnet50_params(),
        'visual_proj': _linear_params(2048, d_model),
        'audio_backbone': make_audio_backbone_params(d_model),
        'transcriptor': [_decoder_block_params(d_model, n_heads, d_keys,
                                               d_values, d_ff)
                         for _ in range(n_blocks)],
        'output_proj': _linear_params(d_model, output_size),
    }


def audio_visual_forward(params, img_nchw, audio):
    # img comes in PyTorch NCHW; convert to NHWC (bf16) for the conv kernels.
    img = jnp.transpose(img_nchw, (0, 2, 3, 1)).astype(BF16)
    feat = resnet50_forward(params['visual_backbone'], img)    # (B, h, w, 2048)
    bsz, fh, fw, fc = feat.shape
    # PyTorch: reshape(B, 2048, h*w).permute(0, 2, 1) -> (B, h*w, 2048); in
    # NHWC the same token order (h-major, w-minor) falls out of a plain reshape.
    vis_tokens = feat.reshape(bsz * fh * fw, fc)
    vis = matmul_bias_act(vis_tokens, params['visual_proj']['w'],
                          shift=params['visual_proj']['b'])
    s_v = fh * fw
    vis = vis.reshape(bsz, s_v, -1)                            # (B, S_v, 512)
    s_v_pad = _round_up(s_v, 8)
    if s_v_pad != s_v:
        vis = jnp.pad(vis, ((0, 0), (0, s_v_pad - s_v), (0, 0)))

    aud, t_valid = audio_backbone_forward(params['audio_backbone'], audio)

    out = aud
    for bp in params['transcriptor']:          # dropout=0.25: eval-mode identity
        out = decoder_block(out, vis, bp, t_valid=t_valid, mem_valid=s_v)
    bsz2, t_pad, d = out.shape
    logits = matmul_bias_act(out.reshape(bsz2 * t_pad, d),
                             params['output_proj']['w'],
                             shift=params['output_proj']['b'],
                             out_dtype=F32)
    logits = logits.reshape(bsz2, t_pad, -1)[:, :t_valid, :]
    return logits                                              # (B, T, out)


if __name__ == "__main__":
    OUTPUT_SIZE = 40
    params = make_audio_visual_model_params(OUTPUT_SIZE)

    key = jax.random.PRNGKey(0)
    k_img, k_aud = jax.random.split(key)
    img = jax.random.normal(k_img, (2, 3, 64, 64), F32)    # NCHW like PyTorch
    audio = jax.random.normal(k_aud, (2, 800), F32)        # raw waveform

    out = audio_visual_forward(params, img, audio)
    out = jax.block_until_ready(out)
    assert out.shape[0] == 2 and out.shape[-1] == OUTPUT_SIZE, out.shape
    assert out.shape[1] == 18, out.shape
    assert bool(jnp.all(jnp.isfinite(out)))
    print("KERNEL_OK")
</pallas_src>

<mosaic_0001>
module attributes {stable_mosaic.version = 11 : i64} {
  func.func @_matmul_epilogue_kernel(%arg0: i32, %arg1: i32, %arg2: memref<256x147xbf16, #tpu.memory_space<vmem>>, %arg3: memref<147x128xbf16, #tpu.memory_space<vmem>>, %arg4: memref<1x128xf32, #tpu.memory_space<vmem>>, %arg5: memref<1x128xf32, #tpu.memory_space<vmem>>, %arg6: memref<256x128xbf16, #tpu.memory_space<vmem>>) attributes {dimension_semantics = [#tpu.dimension_semantics<parallel>, #tpu.dimension_semantics<parallel>], iteration_bounds = array<i64: 8, 1>, scalar_prefetch = 0 : i64, scratch_operands = 0 : i64, tpu.core_type = #tpu.core_type<tc>, window_params = [{transform_indices = @transform_0, window_bounds = array<i64: 256, 147>}, {transform_indices = @transform_1, window_bounds = array<i64: 147, 128>}, {transform_indices = @transform_2, window_bounds = array<i64: 1, 128>}, {transform_indices = @transform_3, window_bounds = array<i64: 1, 128>}, {transform_indices = @transform_4, window_bounds = array<i64: 256, 128>}]} {
    %c0 = arith.constant 0 : index
    %c0_0 = arith.constant 0 : index
    %0 = vector.load %arg2[%c0, %c0_0] : memref<256x147xbf16, #tpu.memory_space<vmem>>, vector<256x147xbf16>
    %c0_1 = arith.constant 0 : index
    %c0_2 = arith.constant 0 : index
    %1 = vector.load %arg3[%c0_1, %c0_2] : memref<147x128xbf16, #tpu.memory_space<vmem>>, vector<147x128xbf16>
    %cst = arith.constant dense<0.000000e+00> : vector<256x128xf32>
    %2 = tpu.matmul %0, %1, %cst {dimension_numbers = #tpu.dot_dimension_numbers<[1], [0], [0], [1], [0, 0, 1, 1], [], []>} : vector<256x147xbf16>, vector<147x128xbf16>, vector<256x128xf32> -> vector<256x128xf32>
    %c0_3 = arith.constant 0 : index
    %c0_4 = arith.constant 0 : index
    %3 = vector.load %arg4[%c0_3, %c0_4] : memref<1x128xf32, #tpu.memory_space<vmem>>, vector<1x128xf32>
    %4 = vector.broadcast %3 : vector<1x128xf32> to vector<256x128xf32>
    %5 = arith.mulf %2, %4 : vector<256x128xf32>
    %c0_5 = arith.constant 0 : index
    %c0_6 = arith.constant 0 : index
    %6 = vector.load %arg5[%c0_5, %c0_6] : memref<1x128xf32, #tpu.memory_space<vmem>>, vector<1x128xf32>
    %7 = vector.broadcast %6 : vector<1x128xf32> to vector<256x128xf32>
    %8 = arith.addf %5, %7 : vector<256x128xf32>
    %cst_7 = arith.constant 0.000000e+00 : f32
    %9 = vector.broadcast %cst_7 : f32 to vector<256x128xf32>
    %10 = arith.maximumf %8, %9 : vector<256x128xf32>
    %11 = arith.truncf %10 : vector<256x128xf32> to vector<256x128xbf16>
    %c0_8 = arith.constant 0 : index
    %c0_9 = arith.constant 0 : index
    %12 = vector.load %arg6[%c0_8, %c0_9] : memref<256x128xbf16, #tpu.memory_space<vmem>>, vector<256x128xbf16>
    tpu.vector_store %arg6[%c0_8, %c0_9], %11 {strides = array<i32>} : memref<256x128xbf16, #tpu.memory_space<vmem>>, vector<256x128xbf16>,
    return
  }
  func.func @transform_0(%arg0: i32, %arg1: i32) -> (i32, i32) {
    %c0_i32 = arith.constant 0 : i32
    %c0_i32_0 = arith.constant 0 : i32
    return %arg0, %c0_i32 : i32, i32
  }
  func.func @transform_1(%arg0: i32, %arg1: i32) -> (i32, i32) {
    %c0_i32 = arith.constant 0 : i32
    %c0_i32_0 = arith.constant 0 : i32
    return %c0_i32, %arg1 : i32, i32
  }
  func.func @transform_2(%arg0: i32, %arg1: i32) -> (i32, i32) {
    %c0_i32 = arith.constant 0 : i32
    %c0_i32_0 = arith.constant 0 : i32
    return %c0_i32, %arg1 : i32, i32
  }
  func.func @transform_3(%arg0: i32, %arg1: i32) -> (i32, i32) {
    %c0_i32 = arith.constant 0 : i32
    %c0_i32_0 = arith.constant 0 : i32
    return %c0_i32, %arg1 : i32, i32
  }
  func.func @transform_4(%arg0: i32, %arg1: i32) -> (i32, i32) {
    %c0_i32 = arith.constant 0 : i32
    return %arg0, %arg1 : i32, i32
  }
}

</mosaic_0001>

<llo_original>
// kernel: tpu_custom_call.1
$region0: #{tpu_custom_call.1}
  #allocation0 [shape = 'u32[]', space=smem, size = 0x4, offset = 0x4, fixed_abs, tag = 'smem constant byte address 0x4 - core index']
  #allocation1 [shape = 'u32[72,128]{1,0:T(1,128)}', space=vmem, size = 0x9000, scoped, tag = 'internal scratch']
  %s0 = inlined_call_operand.vmem [shape: bf16[2048,147], index: 0, kind: input, shape index: {}]
  %s1 = inlined_call_operand.vmem [shape: bf16[147,128], index: 1, kind: input, shape index: {}]
  %s2 = inlined_call_operand.vmem [shape: f32[1,128], index: 2, kind: input, shape index: {}]
  %s3 = inlined_call_operand.vmem [shape: f32[1,128], index: 3, kind: input, shape index: {}]
  %s4 = inlined_call_operand.hbm [shape: bf16[2048,128], index: 4, kind: output, shape index: {}]
  %s5 = sld [smem:[#allocation0]]
  $region49: #{tpu_custom_call.1} parent=0
    _
  %s7 = ssub.s32 1, %s5
  %s8 = scalar_select 0, %s7, %s5
  $region1: #{tpu_custom_call.1} parent=0
    #allocation2 [shape = 'u8[131072]{0}', space=vmem, size = 0x20000, scoped, tag = 'output window, operand 0']
    #allocation3 [shape = 's32[2]{0}', space=sflag, size = 0x8, scoped, tag = 'scoped memory for tpu_custom_call.1']
    %9 = vsyncpa [#allocation3], 0
    %s10 = scalar_lea.sflag [#allocation3], 1
    %11 = vsyncpa %s10, 0
    loop: start=0, step=1, limit=10
    $region2: #{tpu_custom_call.1} parent=1 // loop_pre_header
      _
    $region3: #{tpu_custom_call.1} parent=1 // loop_header
      %s13 = sphi 0, %s17
      %p14 = scmp.ge.s32.totalorder %s13, 10
      %s20 = sphi 0, %s32
      %s21 = sphi 0, %s28
      %s22 = sphi 0, %s20
      %s23 = sphi 0, %s21
      %s24 = sphi 0, %s22
      %s25 = sphi 0, %s23
      %s35 = sphi 0, %s37
      %s38 = sphi 0, %s35
      %s39 = sphi 0, %s38
      %s55 = sphi 0, %s39
      %s61 = sphi 0, %s63
      %s64 = sphi 0, %s61
      %s65 = sphi 0, %s64
      %s81 = sphi 0, %s65
      %s87 = sphi 0, %s89
      %s90 = sphi 0, %s87
      %s91 = sphi 0, %s90
      %s107 = sphi 0, %s91
      %s113 = sphi 0, %s115
      %s116 = sphi 0, %s113
      %s117 = sphi 0, %s116
      %s133 = sphi 0, %s117
      %s141 = sphi 0, %s143
      %s144 = sphi 0, %s141
      %s145 = sphi 0, %s144
      %s161 = sphi 0, %s145
    $region4: #{tpu_custom_call.1} parent=1 // loop_header_branch
      %16 = sbr.rel (%p14) target = $region8
    $region5: #{tpu_custom_call.1} parent=1 // loop_body
      %s18 = ssub.s32 %s13, 1
      %s19 = ssub.s32 %s13, 2
      %s26 = sadd.s32 1, %s21
      %p27 = scmp.ge.s32.totalorder %s26, 1
      %s28 = scalar_select %p27, 0, %s26
      %s29 = sadd.s32 1, %s20
      %s30 = scalar_select %p27, %s29, %s20
      %p31 = scmp.ge.s32.totalorder %s30, 8
      %s32 = scalar_select %p31, 0, %s30
      %s33 = ssub.s32 %s20, %s32
      %p34 = scmp.eq.s32.totalorder %s33, 0
      %s36 = sadd.s32 %s35, 1
      %s37 = scalar_select %p34, %s35, %s36
      %p40 = pneg %p34
      %p41 = scmp.eq.s32.totalorder %s13, 7
      %p42 = por %p40, %p41
      %p43 = scmp.ne.s32.totalorder %s35, %s38
      %p44 = scmp.eq.s32.totalorder %s13, 0
      %p45 = por %p43, %p44
      %p46 = scmp.ne.s32.totalorder %s35, %s38
      %p47 = scmp.eq.s32.totalorder %s18, 7
      %p48 = por %p46, %p47
      %p49 = scmp.ne.s32.totalorder %s38, %s39
      %p50 = scmp.eq.s32.totalorder %s18, 0
      %p51 = por %p49, %p50
      %p52 = scmp.ne.s32.totalorder %s38, %s39
      %p53 = scmp.eq.s32.totalorder %s19, 7
      %p54 = por %p52, %p53
      %p56 = scmp.ne.s32.totalorder %s39, %s55
      %p57 = scmp.eq.s32.totalorder %s19, 0
      %p58 = por %p56, %p57
      %s59 = ssub.s32 %s21, %s28
      %p60 = scmp.eq.s32.totalorder %s59, 0
      %s62 = sadd.s32 %s61, 1
      %s63 = scalar_select %p60, %s61, %s62
      %p66 = pneg %p60
      %p67 = scmp.eq.s32.totalorder %s13, 7
      %p68 = por %p66, %p67
      %p69 = scmp.ne.s32.totalorder %s61, %s64
      %p70 = scmp.eq.s32.totalorder %s13, 0
      %p71 = por %p69, %p70
      %p72 = scmp.ne.s32.totalorder %s61, %s64
      %p73 = scmp.eq.s32.totalorder %s18, 7
      %p74 = por %p72, %p73
      %p75 = scmp.ne.s32.totalorder %s64, %s65
      %p76 = scmp.eq.s32.totalorder %s18, 0
      %p77 = por %p75, %p76
      %p78 = scmp.ne.s32.totalorder %s64, %s65
      %p79 = scmp.eq.s32.totalorder %s19, 7
      %p80 = por %p78, %p79
      %p82 = scmp.ne.s32.totalorder %s65, %s81
      %p83 = scmp.eq.s32.totalorder %s19, 0
      %p84 = por %p82, %p83
      %s85 = ssub.s32 %s21, %s28
      %p86 = scmp.eq.s32.totalorder %s85, 0
      %s88 = sadd.s32 %s87, 1
      %s89 = scalar_select %p86, %s87, %s88
      %p92 = pneg %p86
      %p93 = scmp.eq.s32.totalorder %s13, 7
      %p94 = por %p92, %p93
      %p95 = scmp.ne.s32.totalorder %s87, %s90
      %p96 = scmp.eq.s32.totalorder %s13, 0
      %p97 = por %p95, %p96
      %p98 = scmp.ne.s32.totalorder %s87, %s90
      %p99 = scmp.eq.s32.totalorder %s18, 7
      %p100 = por %p98, %p99
      %p101 = scmp.ne.s32.totalorder %s90, %s91
      %p102 = scmp.eq.s32.totalorder %s18, 0
      %p103 = por %p101, %p102
      %p104 = scmp.ne.s32.totalorder %s90, %s91
      %p105 = scmp.eq.s32.totalorder %s19, 7
      %p106 = por %p104, %p105
      %p108 = scmp.ne.s32.totalorder %s91, %s107
      %p109 = scmp.eq.s32.totalorder %s19, 0
      %p110 = por %p108, %p109
      %s111 = ssub.s32 %s21, %s28
      %p112 = scmp.eq.s32.totalorder %s111, 0
      %s114 = sadd.s32 %s113, 1
      %s115 = scalar_select %p112, %s113, %s114
      %p118 = pneg %p112
      %p119 = scmp.eq.s32.totalorder %s13, 7
      %p120 = por %p118, %p119
      %p121 = scmp.ne.s32.totalorder %s113, %s116
      %p122 = scmp.eq.s32.totalorder %s13, 0
      %p123 = por %p121, %p122
      %p124 = scmp.ne.s32.totalorder %s113, %s116
      %p125 = scmp.eq.s32.totalorder %s18, 7
      %p126 = por %p124, %p125
      %p127 = scmp.ne.s32.totalorder %s116, %s117
      %p128 = scmp.eq.s32.totalorder %s18, 0
      %p129 = por %p127, %p128
      %p130 = scmp.ne.s32.totalorder %s116, %s117
      %p131 = scmp.eq.s32.totalorder %s19, 7
      %p132 = por %p130, %p131
      %p134 = scmp.ne.s32.totalorder %s117, %s133
      %p135 = scmp.eq.s32.totalorder %s19, 0
      %p136 = por %p134, %p135
      %s137 = ssub.s32 %s20, %s32
      %s138 = ssub.s32 %s21, %s28
      %s139 = sor.u32 %s137, %s138
      %p140 = scmp.eq.s32.totalorder %s139, 0
      %s142 = sadd.s32 %s141, 1
      %s143 = scalar_select %p140, %s141, %s142
      %p146 = pneg %p140
      %p147 = scmp.eq.s32.totalorder %s13, 7
      %p148 = por %p146, %p147
      %p149 = scmp.ne.s32.totalorder %s141, %s144
      %p150 = scmp.eq.s32.totalorder %s13, 0
      %p151 = por %p149, %p150
      %p152 = scmp.ne.s32.totalorder %s141, %s144
      %p153 = scmp.eq.s32.totalorder %s18, 7
      %p154 = por %p152, %p153
      %p155 = scmp.ne.s32.totalorder %s144, %s145
      %p156 = scmp.eq.s32.totalorder %s18, 0
      %p157 = por %p155, %p156
      %p158 = scmp.ne.s32.totalorder %s144, %s145
      %p159 = scmp.eq.s32.totalorder %s19, 7
      %p160 = por %p158, %p159
      %p162 = scmp.ne.s32.totalorder %s145, %s161
      %p163 = scmp.eq.s32.totalorder %s19, 0
      %p164 = por %p162, %p163
      %p165 = scmp.le.s32.totalorder 1, %s13
      %p166 = scmp.lt.s32.totalorder %s13, 9
      %p167 = pnand %p165, %p166
      %p168 = pneg %p167
      // Predicated region
      $region9: #{tpu_custom_call.1} parent=5 // pred_check
        _
      $region10: #{tpu_custom_call.1} parent=5 // pred_check_branch
        %170 = sbr.rel (%p167) target = $region12
      $region11: #{tpu_custom_call.1} parent=5 // pred_region
        %s171 = ssub.s32 %s13, 1
        // Predicated region
        $region13: #{tpu_custom_call.1} parent=11 // pred_check
          %p172 = pneg %p77
        $region14: #{tpu_custom_call.1} parent=11 // pred_check_branch
          %174 = sbr.rel (%p172) target = $region16
        $region15: #{tpu_custom_call.1} parent=11 // pred_region
          %p175 = scmp.lt.s32.totalorder %s23, 0
          %s176 = scalar_select %p175, %s23, 0
          %s177 = smul.addr %s176, 4
          %s178 = scalar_lea.vmem %s1, %s177
        $region16: #{tpu_custom_call.1} parent=11 // pred_fallthru
          _
        // Predicated region
        $region17: #{tpu_custom_call.1} parent=11 // pred_check
          %p179 = pneg %p103
        $region18: #{tpu_custom_call.1} parent=11 // pred_check_branch
          %181 = sbr.rel (%p179) target = $region20
        $region19: #{tpu_custom_call.1} parent=11 // pred_region
          %p182 = scmp.lt.s32.totalorder %s23, 0
          %s183 = scalar_select %p182, %s23, 0
          %s184 = scalar_lea.vmem %s2, %s183
        $region20: #{tpu_custom_call.1} parent=11 // pred_fallthru
          _
        // Predicated region
        $region21: #{tpu_custom_call.1} parent=11 // pred_check
          %p185 = pneg %p129
        $region22: #{tpu_custom_call.1} parent=11 // pred_check_branch
          %187 = sbr.rel (%p185) target = $region24
        $region23: #{tpu_custom_call.1} parent=11 // pred_region
          %p188 = scmp.lt.s32.totalorder %s23, 0
          %s189 = scalar_select %p188, %s23, 0
          %s190 = scalar_lea.vmem %s3, %s189
        $region24: #{tpu_custom_call.1} parent=11 // pred_fallthru
          _
      $region12: #{tpu_custom_call.1} parent=5 // pred_fallthru
        _
      %p191 = scmp.lt.s32.totalorder %s13, 8
      // Predicated region
      $region25: #{tpu_custom_call.1} parent=5 // pred_check
        %p192 = pneg %p191
      $region26: #{tpu_custom_call.1} parent=5 // pred_check_branch
        %194 = sbr.rel (%p192) target = $region28
      $region27: #{tpu_custom_call.1} parent=5 // pred_region
        // Predicated region
        $region29: #{tpu_custom_call.1} parent=27 // pred_check
          %p195 = pneg %p45
        $region30: #{tpu_custom_call.1} parent=27 // pred_check_branch
          %197 = sbr.rel (%p195) target = $region32
        $region31: #{tpu_custom_call.1} parent=27 // pred_region
          %s198 = smul.u32 32, %s20
          %p199 = scmp.lt.s32.totalorder %s198, 255
          %s200 = scalar_select %p199, %s198, 255
          %s201 = smul.addr %s200, 2
          %s202 = smul.addr %s201, 4
          %s203 = scalar_lea.vmem %s0, %s202
          %s204 = smul.u32 32, %s20
        $region32: #{tpu_custom_call.1} parent=27 // pred_fallthru
          _
      $region28: #{tpu_custom_call.1} parent=5 // pred_fallthru
        _
      %p205 = scmp.le.s32.totalorder 1, %s13
      %p206 = scmp.lt.s32.totalorder %s13, 9
      %p207 = pnand %p205, %p206
      %p208 = pneg %p207
      // Predicated region
      $region33: #{tpu_custom_call.1} parent=5 // pred_check
        _
      $region34: #{tpu_custom_call.1} parent=5 // pred_check_branch
        %210 = sbr.rel (%p207) target = $region36
      $region35: #{tpu_custom_call.1} parent=5 // pred_region
        %s211 = ssub.s32 %s13, 1
        %s212 = smul.u32 32, %s22
        %p213 = scmp.lt.s32.totalorder %s212, 255
        %s214 = scalar_select %p213, %s212, 255
        %s215 = smul.addr %s214, 2
        %s216 = smul.addr %s215, 4
        %s217 = scalar_lea.vmem %s0, %s216
        %p218 = pneg %p51
        %p219 = pneg %p48
        %p220 = scmp.lt.s32.totalorder %s23, 0
        %s221 = scalar_select %p220, %s23, 0
        %s222 = smul.addr %s221, 4
        %s223 = scalar_lea.vmem %s1, %s222
        %p224 = pneg %p77
        %p225 = pneg %p74
        %p226 = scmp.lt.s32.totalorder %s23, 0
        %s227 = scalar_select %p226, %s23, 0
        %s228 = scalar_lea.vmem %s2, %s227
        %p229 = pneg %p103
        %p230 = pneg %p100
        %p231 = scmp.lt.s32.totalorder %s23, 0
        %s232 = scalar_select %p231, %s23, 0
        %s233 = scalar_lea.vmem %s3, %s232
        %p234 = pneg %p129
        %p235 = pneg %p126
        %p236 = pneg %p157
        %p237 = pneg %p154
        %s238 = sand.u32 %s144, 1
        %s239 = scalar_lea.sflag [#allocation3], %s238
        %s240 = sand.u32 %s144, 1
        %s241 = smul.addr %s240, 128
        %s242 = scalar_lea.vmem [#allocation2], %s241
        %s243 = smul.u32 32, %s22
        %p244 = scmp.lt.s32.totalorder %s243, 255
        %s245 = scalar_select %p244, %s243, 255
        %s246 = smul.addr %s245, 2
        %s247 = smul.addr %s246, 4
        %s248 = scalar_lea.vmem %s0, %s247
        %s249 = smul.u32 32, %s22
        %p250 = scmp.lt.s32.totalorder %s23, 0
        %s251 = scalar_select %p250, %s23, 0
        %s252 = smul.addr %s251, 4
        %s253 = scalar_lea.vmem %s1, %s252
        %p254 = scmp.lt.s32.totalorder %s23, 0
        %s255 = scalar_select %p254, %s23, 0
        %s256 = scalar_lea.vmem %s2, %s255
        %p257 = scmp.lt.s32.totalorder %s23, 0
        %s258 = scalar_select %p257, %s23, 0
        %s259 = scalar_lea.vmem %s3, %s258
        %s260 = smul.u32 32, %s22
        %v262 = vld [vmem:[%s248] sm:$0xff]
        %v263 = vld [vmem:[%s248 + $0x8] sm:$0xff]
        %v264 = vld [vmem:[%s248 + $0x10] sm:$0xff]
        %v265 = vld [vmem:[%s248 + $0x18] sm:$0xff]
        %v266 = vld [vmem:[%s248 + $0x20] sm:$0xff]
        %v267 = vld [vmem:[%s248 + $0x28] sm:$0xff]
        %v268 = vld [vmem:[%s248 + $0x30] sm:$0xff]
        %v269 = vld [vmem:[%s248 + $0x38] sm:$0xff]
        %v270 = vld [vmem:[%s248 + $0x40] sm:$0xff]
        %v271 = vld [vmem:[%s248 + $0x48] sm:$0xff]
        %v272 = vld [vmem:[%s248 + $0x50] sm:$0xff]
        %v273 = vld [vmem:[%s248 + $0x58] sm:$0xff]
        %v274 = vld [vmem:[%s248 + $0x60] sm:$0xff]
        %v275 = vld [vmem:[%s248 + $0x68] sm:$0xff]
        %v276 = vld [vmem:[%s248 + $0x70] sm:$0xff]
        %v277 = vld [vmem:[%s248 + $0x78] sm:$0xff]
        %v278 = vld [vmem:[%s248 + $0x80] sm:$0xff]
        %v279 = vld [vmem:[%s248 + $0x88] sm:$0xff]
        %v280 = vld [vmem:[%s248 + $0x90] sm:$0xff]
        %v281 = vld [vmem:[%s248 + $0x98] sm:$0xff]
        %v282 = vld [vmem:[%s248 + $0xa0] sm:$0xff]
        %v283 = vld [vmem:[%s248 + $0xa8] sm:$0xff]
        %v284 = vld [vmem:[%s248 + $0xb0] sm:$0xff]
        %v285 = vld [vmem:[%s248 + $0xb8] sm:$0xff]
        %v286 = vld [vmem:[%s248 + $0xc0] sm:$0xff]
        %v287 = vld [vmem:[%s248 + $0xc8] sm:$0xff]
        %v288 = vld [vmem:[%s248 + $0xd0] sm:$0xff]
        %v289 = vld [vmem:[%s248 + $0xd8] sm:$0xff]
        %v290 = vld [vmem:[%s248 + $0xe0] sm:$0xff]
        %v291 = vld [vmem:[%s248 + $0xe8] sm:$0xff]
        %v292 = vld [vmem:[%s248 + $0xf0] sm:$0xff]
        %v293 = vld [vmem:[%s248 + $0xf8] sm:$0xff]
        %v294 = vld [vmem:[%s253] sm:$0xf]
        %v295 = vld [vmem:[%s253 + $0x4] sm:$0xf]
        %v296 = vld [vmem:[%s253 + $0x8] sm:$0xf]
        %v297 = vld [vmem:[%s253 + $0xc] sm:$0xf]
        %v298 = vld [vmem:[%s253 + $0x10] sm:$0xf]
        %v299 = vld [vmem:[%s253 + $0x14] sm:$0xf]
        %v300 = vld [vmem:[%s253 + $0x18] sm:$0xf]
        %v301 = vld [vmem:[%s253 + $0x1c] sm:$0xf]
        %v302 = vld [vmem:[%s253 + $0x20] sm:$0xf]
        %v303 = vld [vmem:[%s253 + $0x24] sm:$0xf]
        %v304 = vld [vmem:[%s253 + $0x28] sm:$0xf]
        %v305 = vld [vmem:[%s253 + $0x2c] sm:$0xf]
        %v306 = vld [vmem:[%s253 + $0x30] sm:$0xf]
        %v307 = vld [vmem:[%s253 + $0x34] sm:$0xf]
        %v308 = vld [vmem:[%s253 + $0x38] sm:$0xf]
        %v309 = vld [vmem:[%s253 + $0x3c] sm:$0xf]
        %v310 = vld [vmem:[%s253 + $0x40] sm:$0xf]
        %v311 = vld [vmem:[%s253 + $0x44] sm:$0xf]
        %v312 = vld [vmem:[%s253 + $0x48] sm:$0x3]
        %v345 = vunpack.c.l.b16 %v262
        %v346 = vunpack.c.h.b16 %v262
        %v347 = vunpack.c.l.b16 %v263
        %v348 = vunpack.c.h.b16 %v263
        %v349 = vunpack.c.l.b16 %v264
        %v350 = vunpack.c.h.b16 %v264
        %v351 = vunpack.c.l.b16 %v265
        %v352 = vunpack.c.h.b16 %v265
        %v353 = vunpack.c.l.b16 %v266
        %v354 = vunpack.c.h.b16 %v266
        %v355 = vunpack.c.l.b16 %v267
        %v356 = vunpack.c.h.b16 %v267
        %v357 = vunpack.c.l.b16 %v268
        %v358 = vunpack.c.h.b16 %v268
        %v359 = vunpack.c.l.b16 %v269
        %v360 = vunpack.c.h.b16 %v269
        %v361 = vunpack.c.l.b16 %v270
        %v362 = vunpack.c.h.b16 %v270
        %v363 = vunpack.c.l.b16 %v271
        %v364 = vunpack.c.h.b16 %v271
        %v365 = vunpack.c.l.b16 %v272
        %v366 = vunpack.c.h.b16 %v272
        %v367 = vunpack.c.l.b16 %v273
        %v368 = vunpack.c.h.b16 %v273
        %v369 = vunpack.c.l.b16 %v274
        %v370 = vunpack.c.h.b16 %v274
        %v371 = vunpack.c.l.b16 %v275
        %v372 = vunpack.c.h.b16 %v275
        %v373 = vunpack.c.l.b16 %v276
        %v374 = vunpack.c.h.b16 %v276
        %v375 = vunpack.c.l.b16 %v277
        %v376 = vunpack.c.h.b16 %v277
        %v377 = vunpack.c.l.b16 %v278
        %v378 = vunpack.c.h.b16 %v278
        %v379 = vunpack.c.l.b16 %v279
        %v380 = vunpack.c.h.b16 %v279
        %v381 = vunpack.c.l.b16 %v280
        %v382 = vunpack.c.h.b16 %v280
        %v383 = vunpack.c.l.b16 %v281
        %v384 = vunpack.c.h.b16 %v281
        %v385 = vunpack.c.l.b16 %v282
        %v386 = vunpack.c.h.b16 %v282
        %v387 = vunpack.c.l.b16 %v283
        %v388 = vunpack.c.h.b16 %v283
        %v389 = vunpack.c.l.b16 %v284
        %v390 = vunpack.c.h.b16 %v284
        %v391 = vunpack.c.l.b16 %v285
        %v392 = vunpack.c.h.b16 %v285
        %v393 = vunpack.c.l.b16 %v286
        %v394 = vunpack.c.h.b16 %v286
        %v395 = vunpack.c.l.b16 %v287
        %v396 = vunpack.c.h.b16 %v287
        %v397 = vunpack.c.l.b16 %v288
        %v398 = vunpack.c.h.b16 %v288
        %v399 = vunpack.c.l.b16 %v289
        %v400 = vunpack.c.h.b16 %v289
        %v401 = vunpack.c.l.b16 %v290
        %v402 = vunpack.c.h.b16 %v290
        %v403 = vunpack.c.l.b16 %v291
        %v404 = vunpack.c.h.b16 %v291
        %v405 = vunpack.c.l.b16 %v292
        %v406 = vunpack.c.h.b16 %v292
        %v407 = vunpack.c.l.b16 %v293
        %v408 = vunpack.c.h.b16 %v293
        %v409 = vpack.c.b16 %v347, %v345
        %v410 = vpack.c.b16 %v348, %v346
        %v411 = vpack.c.b16 %v351, %v349
        %v412 = vpack.c.b16 %v352, %v350
        %v413 = vpack.c.b16 %v355, %v353
        %v414 = vpack.c.b16 %v356, %v354
        %v415 = vpack.c.b16 %v359, %v357
        %v416 = vpack.c.b16 %v360, %v358
        %v417 = vpack.c.b16 %v363, %v361
        %v418 = vpack.c.b16 %v364, %v362
        %v419 = vpack.c.b16 %v367, %v365
        %v420 = vpack.c.b16 %v368, %v366
        %v421 = vpack.c.b16 %v371, %v369
        %v422 = vpack.c.b16 %v372, %v370
        %v423 = vpack.c.b16 %v375, %v373
        %v424 = vpack.c.b16 %v376, %v374
        %v425 = vpack.c.b16 %v379, %v377
        %v426 = vpack.c.b16 %v380, %v378
        %v427 = vpack.c.b16 %v383, %v381
        %v428 = vpack.c.b16 %v384, %v382
        %v429 = vpack.c.b16 %v387, %v385
        %v430 = vpack.c.b16 %v388, %v386
        %v431 = vpack.c.b16 %v391, %v389
        %v432 = vpack.c.b16 %v392, %v390
        %v433 = vpack.c.b16 %v395, %v393
        %v434 = vpack.c.b16 %v396, %v394
        %v435 = vpack.c.b16 %v399, %v397
        %v436 = vpack.c.b16 %v400, %v398
        %v437 = vpack.c.b16 %v403, %v401
        %v438 = vpack.c.b16 %v404, %v402
        %v439 = vpack.c.b16 %v407, %v405
        %v440 = vpack.c.b16 %v408, %v406
        %v476 = vunpack.c.l.b16 %v294
        %v477 = vunpack.c.l.b16 %v295
        %v478 = vunpack.c.l.b16 %v296
        %v479 = vunpack.c.l.b16 %v297
        %v480 = vunpack.c.l.b16 %v298
        %v481 = vunpack.c.l.b16 %v299
        %v482 = vunpack.c.l.b16 %v300
        %v483 = vunpack.c.l.b16 %v301
        %v484 = vunpack.c.l.b16 %v302
        %v485 = vunpack.c.l.b16 %v303
        %v486 = vunpack.c.l.b16 %v304
        %v487 = vunpack.c.l.b16 %v305
        %v488 = vunpack.c.l.b16 %v306
        %v489 = vunpack.c.l.b16 %v307
        %v490 = vunpack.c.l.b16 %v308
        %v491 = vunpack.c.l.b16 %v309
        %v492 = vunpack.c.l.b16 %v310
        %v493 = vunpack.c.l.b16 %v311
        %v494 = vunpack.c.l.b16 %v312
        %v495 = vpack.c.b16 %v477, %v476
        %v496 = vpack.c.b16 %v479, %v478
        %v497 = vpack.c.b16 %v481, %v480
        %v498 = vpack.c.b16 %v483, %v482
        %v499 = vpack.c.b16 %v485, %v484
        %v500 = vpack.c.b16 %v487, %v486
        %v501 = vpack.c.b16 %v489, %v488
        %v502 = vpack.c.b16 %v491, %v490
        %v503 = vpack.c.b16 %v493, %v492
        %v504 = vpack.c.b16 %v494, %v494
        %vm514 = vcmask 154624
        %v516 = vsel %vm514, %v410, 0
        %v519 = vsel %vm514, %v412, 0
        %v522 = vsel %vm514, %v414, 0
        %v525 = vsel %vm514, %v416, 0
        %v528 = vsel %vm514, %v418, 0
        %v531 = vsel %vm514, %v420, 0
        %v534 = vsel %vm514, %v422, 0
        %v537 = vsel %vm514, %v424, 0
        %v540 = vsel %vm514, %v426, 0
        %v543 = vsel %vm514, %v428, 0
        %v546 = vsel %vm514, %v430, 0
        %v549 = vsel %vm514, %v432, 0
        %v552 = vsel %vm514, %v434, 0
        %v555 = vsel %vm514, %v436, 0
        %v558 = vsel %vm514, %v438, 0
        %v561 = vsel %vm514, %v440, 0
        %vm563 = vcmask 1040384
        %vm564 = vcmask 1041408
        %v565 = vsel %vm563, 4294967295, 65535
        %v566 = vsel %vm564, %v565, 0
        %v568 = vand.u32 %v504, %v566
        %570 = vmatpush.bf16.msra.mxu0 %v502
        %571 = vmatpush.bf16.msra.mxu0 %v501
        %572 = vmatpush.bf16.msra.mxu0 %v500
        %573 = vmatpush.bf16.msra.mxu0 %v499
        %574 = vmatpush.bf16.msra.mxu0 %v498
        %575 = vmatpush.bf16.msra.mxu0 %v497
        %576 = vmatpush.bf16.msra.mxu0 %v496
        %577 = vmatpush.bf16.msra.mxu0 %v495
        %578 = vmatmul.bf16.gmra.mxu0 %v409
        %v579 = vpop.f32.mrf.mxu0
        %v580 = vadd.f32 0.0, %v579
        %v581 = vpop.f32.mrf.mxu0
        %v582 = vadd.f32 0.0, %v581
        %583 = vmatmul.bf16.gmra.mxu0 %v411
        %v584 = vpop.f32.mrf.mxu0
        %v585 = vadd.f32 0.0, %v584
        %v586 = vpop.f32.mrf.mxu0
        %v587 = vadd.f32 0.0, %v586
        %588 = vmatmul.bf16.gmra.mxu0 %v413
        %v589 = vpop.f32.mrf.mxu0
        %v590 = vadd.f32 0.0, %v589
        %v591 = vpop.f32.mrf.mxu0
        %v592 = vadd.f32 0.0, %v591
        %593 = vmatmul.bf16.gmra.mxu0 %v415
        %v594 = vpop.f32.mrf.mxu0
        %v595 = vadd.f32 0.0, %v594
        %v596 = vpop.f32.mrf.mxu0
        %v597 = vadd.f32 0.0, %v596
        %598 = vmatmul.bf16.gmra.mxu0 %v417
        %v599 = vpop.f32.mrf.mxu0
        %v600 = vadd.f32 0.0, %v599
        %v601 = vpop.f32.mrf.mxu0
        %v602 = vadd.f32 0.0, %v601
        %603 = vmatmul.bf16.gmra.mxu0 %v419
        %v604 = vpop.f32.mrf.mxu0
        %v605 = vadd.f32 0.0, %v604
        %v606 = vpop.f32.mrf.mxu0
        %v607 = vadd.f32 0.0, %v606
        %608 = vmatmul.bf16.gmra.mxu0 %v421
        %v609 = vpop.f32.mrf.mxu0
        %v610 = vadd.f32 0.0, %v609
        %v611 = vpop.f32.mrf.mxu0
        %v612 = vadd.f32 0.0, %v611
        %613 = vmatmul.bf16.gmra.mxu0 %v423
        %v614 = vpop.f32.mrf.mxu0
        %v615 = vadd.f32 0.0, %v614
        %v616 = vpop.f32.mrf.mxu0
        %v617 = vadd.f32 0.0, %v616
        %618 = vmatmul.bf16.gmra.mxu0 %v425
        %v619 = vpop.f32.mrf.mxu0
        %v620 = vadd.f32 0.0, %v619
        %v621 = vpop.f32.mrf.mxu0
        %v622 = vadd.f32 0.0, %v621
        %623 = vmatmul.bf16.gmra.mxu0 %v427
        %v624 = vpop.f32.mrf.mxu0
        %v625 = vadd.f32 0.0, %v624
        %v626 = vpop.f32.mrf.mxu0
        %v627 = vadd.f32 0.0, %v626
        %628 = vmatmul.bf16.gmra.mxu0 %v429
        %v629 = vpop.f32.mrf.mxu0
        %v630 = vadd.f32 0.0, %v629
        %v631 = vpop.f32.mrf.mxu0
        %v632 = vadd.f32 0.0, %v631
        %633 = vmatmul.bf16.gmra.mxu0 %v431
        %v634 = vpop.f32.mrf.mxu0
        %v635 = vadd.f32 0.0, %v634
        %v636 = vpop.f32.mrf.mxu0
        %v637 = vadd.f32 0.0, %v636
        %638 = vmatmul.bf16.gmra.mxu0 %v433
        %v639 = vpop.f32.mrf.mxu0
        %v640 = vadd.f32 0.0, %v639
        %v641 = vpop.f32.mrf.mxu0
        %v642 = vadd.f32 0.0, %v641
        %643 = vmatmul.bf16.gmra.mxu0 %v435
        %v644 = vpop.f32.mrf.mxu0
        %v645 = vadd.f32 0.0, %v644
        %v646 = vpop.f32.mrf.mxu0
        %v647 = vadd.f32 0.0, %v646
        %648 = vmatmul.bf16.gmra.mxu0 %v437
        %v649 = vpop.f32.mrf.mxu0
        %v650 = vadd.f32 0.0, %v649
        %v651 = vpop.f32.mrf.mxu0
        %v652 = vadd.f32 0.0, %v651
        %653 = vmatmul.bf16.gmra.mxu0 %v439
        %v654 = vpop.f32.mrf.mxu0
        %v655 = vadd.f32 0.0, %v654
        %v656 = vpop.f32.mrf.mxu0
        %v657 = vadd.f32 0.0, %v656
        %658 = vdwg.mxu0
        %659 = vmatpush.bf16.msra.mxu0 0
        %660 = vmatpush.bf16.msra.mxu0 0
        %661 = vmatpush.bf16.msra.mxu0 0
        %662 = vmatpush.bf16.msra.mxu0 0
        %663 = vmatpush.bf16.msra.mxu0 0
        %664 = vmatpush.bf16.msra.mxu0 0
        %665 = vmatpush.bf16.msra.mxu0 %v568
        %666 = vmatpush.bf16.msra.mxu0 %v503
        %667 = vmatmul.bf16.gmra.mxu0 %v516
        %v668 = vpop.f32.mrf.mxu0
        %v669 = vadd.f32 %v580, %v668
        %v670 = vpop.f32.mrf.mxu0
        %v671 = vadd.f32 %v582, %v670
        %672 = vmatmul.bf16.gmra.mxu0 %v519
        %v673 = vpop.f32.mrf.mxu0
        %v674 = vadd.f32 %v585, %v673
        %v675 = vpop.f32.mrf.mxu0
        %v676 = vadd.f32 %v587, %v675
        %677 = vmatmul.bf16.gmra.mxu0 %v522
        %v678 = vpop.f32.mrf.mxu0
        %v679 = vadd.f32 %v590, %v678
        %v680 = vpop.f32.mrf.mxu0
        %v681 = vadd.f32 %v592, %v680
        %682 = vmatmul.bf16.gmra.mxu0 %v525
        %v683 = vpop.f32.mrf.mxu0
        %v684 = vadd.f32 %v595, %v683
        %v685 = vpop.f32.mrf.mxu0
        %v686 = vadd.f32 %v597, %v685
        %687 = vmatmul.bf16.gmra.mxu0 %v528
        %v688 = vpop.f32.mrf.mxu0
        %v689 = vadd.f32 %v600, %v688
        %v690 = vpop.f32.mrf.mxu0
        %v691 = vadd.f32 %v602, %v690
        %692 = vmatmul.bf16.gmra.mxu0 %v531
        %v693 = vpop.f32.mrf.mxu0
        %v694 = vadd.f32 %v605, %v693
        %v695 = vpop.f32.mrf.mxu0
        %v696 = vadd.f32 %v607, %v695
        %697 = vmatmul.bf16.gmra.mxu0 %v534
        %v698 = vpop.f32.mrf.mxu0
        %v699 = vadd.f32 %v610, %v698
        %v700 = vpop.f32.mrf.mxu0
        %v701 = vadd.f32 %v612, %v700
        %702 = vmatmul.bf16.gmra.mxu0 %v537
        %v703 = vpop.f32.mrf.mxu0
        %v704 = vadd.f32 %v615, %v703
        %v705 = vpop.f32.mrf.mxu0
        %v706 = vadd.f32 %v617, %v705
        %707 = vmatmul.bf16.gmra.mxu0 %v540
        %v708 = vpop.f32.mrf.mxu0
        %v709 = vadd.f32 %v620, %v708
        %v710 = vpop.f32.mrf.mxu0
        %v711 = vadd.f32 %v622, %v710
        %712 = vmatmul.bf16.gmra.mxu0 %v543
        %v713 = vpop.f32.mrf.mxu0
        %v714 = vadd.f32 %v625, %v713
        %v715 = vpop.f32.mrf.mxu0
        %v716 = vadd.f32 %v627, %v715
        %717 = vmatmul.bf16.gmra.mxu0 %v546
        %v718 = vpop.f32.mrf.mxu0
        %v719 = vadd.f32 %v630, %v718
        %v720 = vpop.f32.mrf.mxu0
        %v721 = vadd.f32 %v632, %v720
        %722 = vmatmul.bf16.gmra.mxu0 %v549
        %v723 = vpop.f32.mrf.mxu0
        %v724 = vadd.f32 %v635, %v723
        %v725 = vpop.f32.mrf.mxu0
        %v726 = vadd.f32 %v637, %v725
        %727 = vmatmul.bf16.gmra.mxu0 %v552
        %v728 = vpop.f32.mrf.mxu0
        %v729 = vadd.f32 %v640, %v728
        %v730 = vpop.f32.mrf.mxu0
        %v731 = vadd.f32 %v642, %v730
        %732 = vmatmul.bf16.gmra.mxu0 %v555
        %v733 = vpop.f32.mrf.mxu0
        %v734 = vadd.f32 %v645, %v733
        %v735 = vpop.f32.mrf.mxu0
        %v736 = vadd.f32 %v647, %v735
        %737 = vmatmul.bf16.gmra.mxu0 %v558
        %v738 = vpop.f32.mrf.mxu0
        %v739 = vadd.f32 %v650, %v738
        %v740 = vpop.f32.mrf.mxu0
        %v741 = vadd.f32 %v652, %v740
        %742 = vmatmul.bf16.gmra.mxu0 %v561
        %v743 = vpop.f32.mrf.mxu0
        %v744 = vadd.f32 %v655, %v743
        %v745 = vpop.f32.mrf.mxu0
        %v746 = vadd.f32 %v657, %v745
        %747 = vdwg.mxu0
        %v748 = vld [vmem:[%s256] sm:$0x1]
        %v750 = vperm.slane %v748, 0
        %v752 = vmul.f32 %v669, %v750
        %v753 = vmul.f32 %v671, %v750
        %v754 = vmul.f32 %v674, %v750
        %v755 = vmul.f32 %v676, %v750
        %v756 = vmul.f32 %v679, %v750
        %v757 = vmul.f32 %v681, %v750
        %v758 = vmul.f32 %v684, %v750
        %v759 = vmul.f32 %v686, %v750
        %v760 = vmul.f32 %v689, %v750
        %v761 = vmul.f32 %v691, %v750
        %v762 = vmul.f32 %v694, %v750
        %v763 = vmul.f32 %v696, %v750
        %v764 = vmul.f32 %v699, %v750
        %v765 = vmul.f32 %v701, %v750
        %v766 = vmul.f32 %v704, %v750
        %v767 = vmul.f32 %v706, %v750
        %v768 = vmul.f32 %v709, %v750
        %v769 = vmul.f32 %v711, %v750
        %v770 = vmul.f32 %v714, %v750
        %v771 = vmul.f32 %v716, %v750
        %v772 = vmul.f32 %v719, %v750
        %v773 = vmul.f32 %v721, %v750
        %v774 = vmul.f32 %v724, %v750
        %v775 = vmul.f32 %v726, %v750
        %v776 = vmul.f32 %v729, %v750
        %v777 = vmul.f32 %v731, %v750
        %v778 = vmul.f32 %v734, %v750
        %v779 = vmul.f32 %v736, %v750
        %v780 = vmul.f32 %v739, %v750
        %v781 = vmul.f32 %v741, %v750
        %v782 = vmul.f32 %v744, %v750
        %v783 = vmul.f32 %v746, %v750
        %v784 = vld [vmem:[%s259] sm:$0x1]
        %v786 = vperm.slane %v784, 0
        %v788 = vadd.f32 %v752, %v786
        %v789 = vadd.f32 %v753, %v786
        %v790 = vadd.f32 %v754, %v786
        %v791 = vadd.f32 %v755, %v786
        %v792 = vadd.f32 %v756, %v786
        %v793 = vadd.f32 %v757, %v786
        %v794 = vadd.f32 %v758, %v786
        %v795 = vadd.f32 %v759, %v786
        %v796 = vadd.f32 %v760, %v786
        %v797 = vadd.f32 %v761, %v786
        %v798 = vadd.f32 %v762, %v786
        %v799 = vadd.f32 %v763, %v786
        %v800 = vadd.f32 %v764, %v786
        %v801 = vadd.f32 %v765, %v786
        %v802 = vadd.f32 %v766, %v786
        %v803 = vadd.f32 %v767, %v786
        %v804 = vadd.f32 %v768, %v786
        %v805 = vadd.f32 %v769, %v786
        %v806 = vadd.f32 %v770, %v786
        %v807 = vadd.f32 %v771, %v786
        %v808 = vadd.f32 %v772, %v786
        %v809 = vadd.f32 %v773, %v786
        %v810 = vadd.f32 %v774, %v786
        %v811 = vadd.f32 %v775, %v786
        %v812 = vadd.f32 %v776, %v786
        %v813 = vadd.f32 %v777, %v786
        %v814 = vadd.f32 %v778, %v786
        %v815 = vadd.f32 %v779, %v786
        %v816 = vadd.f32 %v780, %v786
        %v817 = vadd.f32 %v781, %v786
        %v818 = vadd.f32 %v782, %v786
        %v819 = vadd.f32 %v783, %v786
        %v820 = vmax.f32 %v788, 0.0
        %v821 = vmax.f32 %v789, 0.0
        %v822 = vmax.f32 %v790, 0.0
        %v823 = vmax.f32 %v791, 0.0
        %v824 = vmax.f32 %v792, 0.0
        %v825 = vmax.f32 %v793, 0.0
        %v826 = vmax.f32 %v794, 0.0
        %v827 = vmax.f32 %v795, 0.0
        %v828 = vmax.f32 %v796, 0.0
        %v829 = vmax.f32 %v797, 0.0
        %v830 = vmax.f32 %v798, 0.0
        %v831 = vmax.f32 %v799, 0.0
        %v832 = vmax.f32 %v800, 0.0
        %v833 = vmax.f32 %v801, 0.0
        %v834 = vmax.f32 %v802, 0.0
        %v835 = vmax.f32 %v803, 0.0
        %v836 = vmax.f32 %v804, 0.0
        %v837 = vmax.f32 %v805, 0.0
        %v838 = vmax.f32 %v806, 0.0
        %v839 = vmax.f32 %v807, 0.0
        %v840 = vmax.f32 %v808, 0.0
        %v841 = vmax.f32 %v809, 0.0
        %v842 = vmax.f32 %v810, 0.0
        %v843 = vmax.f32 %v811, 0.0
        %v844 = vmax.f32 %v812, 0.0
        %v845 = vmax.f32 %v813, 0.0
        %v846 = vmax.f32 %v814, 0.0
        %v847 = vmax.f32 %v815, 0.0
        %v848 = vmax.f32 %v816, 0.0
        %v849 = vmax.f32 %v817, 0.0
        %v850 = vmax.f32 %v818, 0.0
        %v851 = vmax.f32 %v819, 0.0
        %v852 = vpack.c.bf16 %v820, %v820
        %v853 = vpack.c.bf16 %v821, %v821
        %v854 = vpack.c.bf16 %v822, %v822
        %v855 = vpack.c.bf16 %v823, %v823
        %v856 = vpack.c.bf16 %v824, %v824
        %v857 = vpack.c.bf16 %v825, %v825
        %v858 = vpack.c.bf16 %v826, %v826
        %v859 = vpack.c.bf16 %v827, %v827
        %v860 = vpack.c.bf16 %v828, %v828
        %v861 = vpack.c.bf16 %v829, %v829
        %v862 = vpack.c.bf16 %v830, %v830
        %v863 = vpack.c.bf16 %v831, %v831
        %v864 = vpack.c.bf16 %v832, %v832
        %v865 = vpack.c.bf16 %v833, %v833
        %v866 = vpack.c.bf16 %v834, %v834
        %v867 = vpack.c.bf16 %v835, %v835
        %v868 = vpack.c.bf16 %v836, %v836
        %v869 = vpack.c.bf16 %v837, %v837
        %v870 = vpack.c.bf16 %v838, %v838
        %v871 = vpack.c.bf16 %v839, %v839
        %v872 = vpack.c.bf16 %v840, %v840
        %v873 = vpack.c.bf16 %v841, %v841
        %v874 = vpack.c.bf16 %v842, %v842
        %v875 = vpack.c.bf16 %v843, %v843
        %v876 = vpack.c.bf16 %v844, %v844
        %v877 = vpack.c.bf16 %v845, %v845
        %v878 = vpack.c.bf16 %v846, %v846
        %v879 = vpack.c.bf16 %v847, %v847
        %v880 = vpack.c.bf16 %v848, %v848
        %v881 = vpack.c.bf16 %v849, %v849
        %v882 = vpack.c.bf16 %v850, %v850
        %v883 = vpack.c.bf16 %v851, %v851
        %884 = vst [vmem:[%s242] sm:$0xf] %v852
        %885 = vst [vmem:[%s242 + $0x4] sm:$0xf] %v853
        %886 = vst [vmem:[%s242 + $0x8] sm:$0xf] %v854
        %887 = vst [vmem:[%s242 + $0xc] sm:$0xf] %v855
        %888 = vst [vmem:[%s242 + $0x10] sm:$0xf] %v856
        %889 = vst [vmem:[%s242 + $0x14] sm:$0xf] %v857
        %890 = vst [vmem:[%s242 + $0x18] sm:$0xf] %v858
        %891 = vst [vmem:[%s242 + $0x1c] sm:$0xf] %v859
        %892 = vst [vmem:[%s242 + $0x20] sm:$0xf] %v860
        %893 = vst [vmem:[%s242 + $0x24] sm:$0xf] %v861
        %894 = vst [vmem:[%s242 + $0x28] sm:$0xf] %v862
        %895 = vst [vmem:[%s242 + $0x2c] sm:$0xf] %v863
        %896 = vst [vmem:[%s242 + $0x30] sm:$0xf] %v864
        %897 = vst [vmem:[%s242 + $0x34] sm:$0xf] %v865
        %898 = vst [vmem:[%s242 + $0x38] sm:$0xf] %v866
        %899 = vst [vmem:[%s242 + $0x3c] sm:$0xf] %v867
        %900 = vst [vmem:[%s242 + $0x40] sm:$0xf] %v868
        %901 = vst [vmem:[%s242 + $0x44] sm:$0xf] %v869
        %902 = vst [vmem:[%s242 + $0x48] sm:$0xf] %v870
        %903 = vst [vmem:[%s242 + $0x4c] sm:$0xf] %v871
        %904 = vst [vmem:[%s242 + $0x50] sm:$0xf] %v872
        %905 = vst [vmem:[%s242 + $0x54] sm:$0xf] %v873
        %906 = vst [vmem:[%s242 + $0x58] sm:$0xf] %v874
        %907 = vst [vmem:[%s242 + $0x5c] sm:$0xf] %v875
        %908 = vst [vmem:[%s242 + $0x60] sm:$0xf] %v876
        %909 = vst [vmem:[%s242 + $0x64] sm:$0xf] %v877
        %910 = vst [vmem:[%s242 + $0x68] sm:$0xf] %v878
        %911 = vst [vmem:[%s242 + $0x6c] sm:$0xf] %v879
        %912 = vst [vmem:[%s242 + $0x70] sm:$0xf] %v880
        %913 = vst [vmem:[%s242 + $0x74] sm:$0xf] %v881
        %914 = vst [vmem:[%s242 + $0x78] sm:$0xf] %v882
        %915 = vst [vmem:[%s242 + $0x7c] sm:$0xf] %v883
        %s916 = sand.u32 %s144, 1
        %s917 = scalar_lea.sflag [#allocation3], %s916
        %s918 = sand.u32 %s144, 1
        %s919 = smul.addr %s918, 128
        %s920 = scalar_lea.vmem [#allocation2], %s919
        // Predicated region
        $region37: #{tpu_custom_call.1} parent=35 // pred_check
          %p921 = pneg %p154
        $region38: #{tpu_custom_call.1} parent=35 // pred_check_branch
          %923 = sbr.rel (%p921) target = $region40
        $region39: #{tpu_custom_call.1} parent=35 // pred_region
          %s924 = smul.u32 32, %s22
          %926 = vsyncadd %s917, 0
          %s927 = sadd.s32 %s23, %s924
          %s928 = smul.addr %s927, 4
          %s929 = scalar_lea.hbm %s4, %s928
          %s930 = sshll.u32 %s920, 4
          %s931 = int_to_ptr.vmem [resolvable:$true] %s930
          %s932 = sshll.u32 %s929, 4
          %s933 = int_to_ptr.hbm [resolvable:$true] %s932
          %938 = dma.vmem_to_hbm [thread:$0]  %s931, 2048, %s933, %s917, 64, 64, 4
        $region40: #{tpu_custom_call.1} parent=35 // pred_fallthru
          _
      $region36: #{tpu_custom_call.1} parent=5 // pred_fallthru
        _
      %p939 = scmp.le.s32.totalorder 2, %s13
      // Predicated region
      $region41: #{tpu_custom_call.1} parent=5 // pred_check
        %p940 = pneg %p939
      $region42: #{tpu_custom_call.1} parent=5 // pred_check_branch
        %942 = sbr.rel (%p940) target = $region44
      $region43: #{tpu_custom_call.1} parent=5 // pred_region
        %s943 = ssub.s32 %s13, 2
        // Predicated region
        $region45: #{tpu_custom_call.1} parent=43 // pred_check
          %p944 = pneg %p160
        $region46: #{tpu_custom_call.1} parent=43 // pred_check_branch
          %946 = sbr.rel (%p944) target = $region48
        $region47: #{tpu_custom_call.1} parent=43 // pred_region
          %s947 = sand.u32 %s145, 1
          %s948 = scalar_lea.sflag [#allocation3], %s947
          %s949 = sand.u32 %s145, 1
          %s950 = smul.addr %s949, 128
          %s951 = scalar_lea.vmem [#allocation2], %s950
          %953 = dma.done %s948, 2048
        $region48: #{tpu_custom_call.1} parent=43 // pred_fallthru
          _
      $region44: #{tpu_custom_call.1} parent=5 // pred_fallthru
        _
    $region6: #{tpu_custom_call.1} parent=1 // loop_footer
      %s17 = sadd.s32 1, %s13
    $region7: #{tpu_custom_call.1} parent=1 // loop_footer_branch
      %12 = sbr.rel target = $region3
    $region8: #{tpu_custom_call.1} parent=1 // loop_exit
      _
    %954 = vsyncpa [#allocation3], 1
    %s955 = scalar_lea.sflag [#allocation3], 1
    %956 = vsyncpa %s955, 1

</llo_original>
